<compile_context>
chip_gen: v7x
topology: tpu7x:2x2x1
jax: 0.10.0
libtpu: 0.0.40
codegen_flags: <defaults>
</compile_context>

<pallas_src>
import functools
import numpy as np
import jax
import jax.numpy as jnp
from jax.experimental import pallas as pl
from jax.experimental.pallas import tpu as pltpu


# ----------------------------------------------------------------------------
# Generation-aware VMEM budgeting
# ----------------------------------------------------------------------------
def _vmem_capacity_bytes():
    try:
        info = pltpu.get_tpu_info()
        cap = int(getattr(info, "vmem_capacity_bytes", 128 * 1024 * 1024))
        if cap <= 0:
            cap = 128 * 1024 * 1024
        return cap
    except Exception:
        return 128 * 1024 * 1024


_VMEM_CAP = _vmem_capacity_bytes()
_VMEM_LIMIT_BYTES = min(100 * 1024 * 1024, (_VMEM_CAP * 3) // 4)   # <=48MiB on v7x
_BLOCK_BYTE_BUDGET = max(2 * 1024 * 1024, _VMEM_CAP // 16)


def _round_up(x, m):
    return ((x + m - 1) // m) * m


def _choose_tm(M, bytes_per_row, cap=2048):
    """Row tile for the fused matmuls: big, multiple of 8, <= round_up(M, 8),
    capped so the grid has >=2 steps (v7x megacore), preferably dividing M."""
    m8 = _round_up(M, 8)
    tm = _BLOCK_BYTE_BUDGET // max(int(bytes_per_row), 1)
    tm = max(8, min(cap, (tm // 8) * 8, m8))
    if m8 >= 16:                                   # keep >=2 grid steps
        half = max(8, ((m8 // 2) // 8) * 8)
        tm = min(tm, half)
    if M % tm != 0:
        lo = max(8, tm - 512)
        for cand in range(tm, lo - 1, -8):
            if M % cand == 0:
                return cand
    return tm


def _pick_row_chunk(hout, wout, c):
    """Output-row chunk for the depthwise kernel: divides hout, keeps the f32
    accumulator (TR, Wout, C) <= 64KiB (<=16 vregs), and keeps >=2 grid steps."""
    budget = 64 * 1024
    cap = max(1, (hout + 1) // 2) if hout >= 4 else hout
    best = 1
    for tr in range(1, cap + 1):
        if hout % tr == 0 and tr * wout * c * 4 <= budget:
            best = tr
    return best


# ----------------------------------------------------------------------------
# Pallas kernels
# ----------------------------------------------------------------------------
def _matmul_bias_kernel(x_ref, w_ref, b_ref, o_ref, *, relu):
    # bf16 MXU matmul with f32 accumulation; BN scale pre-folded into w.
    acc = jnp.dot(x_ref[...], w_ref[...], preferred_element_type=jnp.float32)
    y = acc + b_ref[...]
    if relu:
        y = jnp.maximum(y, 0.0)
    o_ref[...] = y.astype(o_ref.dtype)


def _concat_matmul_kernel(left_ref, x_ref, w_ref, b_ref, o_ref, *, c_left, relu):
    # out = concat(left_passthrough, [relu](x @ w + b)) -> lane-dense block output,
    # fuses the block-tail 1x1 conv with the channel concat (stride-1 blocks).
    y = jnp.dot(x_ref[...], w_ref[...], preferred_element_type=jnp.float32) + b_ref[...]
    if relu:
        y = jnp.maximum(y, 0.0)
    o_ref[:, :c_left] = left_ref[...].astype(o_ref.dtype)
    o_ref[:, c_left:] = y.astype(o_ref.dtype)


def _dual_concat_matmul_kernel(xl_ref, wl_ref, bl_ref, xr_ref, wr_ref, br_ref,
                               o_ref, *, c_left):
    # out = concat(relu(xl @ wl + bl), relu(xr @ wr + br))
    # (stride-2 blocks: proj_pw and pw2 fused into one kernel + concat).
    yl = jnp.dot(xl_ref[...], wl_ref[...], preferred_element_type=jnp.float32) + bl_ref[...]
    yl = jnp.maximum(yl, 0.0)
    yr = jnp.dot(xr_ref[...], wr_ref[...], preferred_element_type=jnp.float32) + br_ref[...]
    yr = jnp.maximum(yr, 0.0)
    o_ref[:, :c_left] = yl.astype(o_ref.dtype)
    o_ref[:, c_left:] = yr.astype(o_ref.dtype)


def _dw_kernel(x_ref, w_ref, b_ref, o_ref, *, k, stride, tr, wout, relu):
    # x_ref: (stride*stride, Hq, Wq, C) phase-decomposed padded image (VMEM).
    # For each (phase, kh) the row slab is loaded + widened to f32 ONCE at full
    # Wq width; the k kw-taps are static slices of that register-resident slab.
    r = pl.program_id(1)
    row0 = r * tr
    c = x_ref.shape[-1]
    acc = jnp.zeros((tr, wout, c), jnp.float32)
    for kh in range(k):
        h0 = kh // stride
        for kwp in range(stride):
            ph = (kh % stride) * stride + kwp
            slab = x_ref[ph, pl.ds(row0 + h0, tr), :, :].astype(jnp.float32)
            for kw in range(kwp, k, stride):
                w0 = kw // stride
                acc = acc + slab[:, w0:w0 + wout, :] * w_ref[kh * k + kw]
    y = acc + b_ref[0]
    if relu:
        y = jnp.maximum(y, 0.0)
    o_ref[0] = y.astype(o_ref.dtype)


def _pool_fc_kernel(x_ref, w_ref, o_ref):
    # Fused global AvgPool(7x7) + bias-free Linear (classifier).
    pooled = jnp.mean(x_ref[...].astype(jnp.float32), axis=1)
    o_ref[...] = jnp.dot(pooled.astype(w_ref.dtype), w_ref[...],
                         preferred_element_type=jnp.float32)


# ----------------------------------------------------------------------------
# Cached pallas_call builders (dedupes Mosaic payloads across identical shapes)
# ----------------------------------------------------------------------------
_CPARAMS = lambda sem: pltpu.CompilerParams(      # noqa: E731
    dimension_semantics=sem, vmem_limit_bytes=_VMEM_LIMIT_BYTES)


@functools.lru_cache(maxsize=None)
def _matmul_fn(Mp, K, Cout, TM, relu, out_dtype_name):
    return pl.pallas_call(
        functools.partial(_matmul_bias_kernel, relu=relu),
        out_shape=jax.ShapeDtypeStruct((Mp, Cout), jnp.dtype(out_dtype_name)),
        grid=(Mp // TM,),
        in_specs=[
            pl.BlockSpec((TM, K), lambda i: (i, 0)),
            pl.BlockSpec((K, Cout), lambda i: (0, 0)),
            pl.BlockSpec((1, Cout), lambda i: (0, 0)),
        ],
        out_specs=pl.BlockSpec((TM, Cout), lambda i: (i, 0)),
        compiler_params=_CPARAMS(("parallel",)),
    )


@functools.lru_cache(maxsize=None)
def _concat_matmul_fn(Mp, CL, K, Cout, TM, relu):
    return pl.pallas_call(
        functools.partial(_concat_matmul_kernel, c_left=CL, relu=relu),
        out_shape=jax.ShapeDtypeStruct((Mp, CL + Cout), jnp.bfloat16),
        grid=(Mp // TM,),
        in_specs=[
            pl.BlockSpec((TM, CL), lambda i: (i, 0)),
            pl.BlockSpec((TM, K), lambda i: (i, 0)),
            pl.BlockSpec((K, Cout), lambda i: (0, 0)),
            pl.BlockSpec((1, Cout), lambda i: (0, 0)),
        ],
        out_specs=pl.BlockSpec((TM, CL + Cout), lambda i: (i, 0)),
        compiler_params=_CPARAMS(("parallel",)),
    )


@functools.lru_cache(maxsize=None)
def _dual_concat_matmul_fn(Mp, Kl, CL, Kr, Cr, TM):
    return pl.pallas_call(
        functools.partial(_dual_concat_matmul_kernel, c_left=CL),
        out_shape=jax.ShapeDtypeStruct((Mp, CL + Cr), jnp.bfloat16),
        grid=(Mp // TM,),
        in_specs=[
            pl.BlockSpec((TM, Kl), lambda i: (i, 0)),
            pl.BlockSpec((Kl, CL), lambda i: (0, 0)),
            pl.BlockSpec((1, CL), lambda i: (0, 0)),
            pl.BlockSpec((TM, Kr), lambda i: (i, 0)),
            pl.BlockSpec((Kr, Cr), lambda i: (0, 0)),
            pl.BlockSpec((1, Cr), lambda i: (0, 0)),
        ],
        out_specs=pl.BlockSpec((TM, CL + Cr), lambda i: (i, 0)),
        compiler_params=_CPARAMS(("parallel",)),
    )


@functools.lru_cache(maxsize=None)
def _dw_fn(N, s, Hq, Wq, C, Hout, Wout, TR, k, relu, dtype_name):
    T = k * k
    RC = Hout // TR
    kernel = functools.partial(_dw_kernel, k=k, stride=s, tr=TR, wout=Wout,
                               relu=relu)
    return pl.pallas_call(
        kernel,
        out_shape=jax.ShapeDtypeStruct((N, Hout, Wout, C), jnp.dtype(dtype_name)),
        grid=(N, RC),
        in_specs=[
            # Full (phase-decomposed) padded image; constant block index over
            # the row grid -> Pallas fetches it once per image.
            pl.BlockSpec((s * s, Hq, Wq, C), lambda n, r: (n, 0, 0, 0)),
            pl.BlockSpec((T, C), lambda n, r: (0, 0)),
            pl.BlockSpec((1, C), lambda n, r: (0, 0)),
        ],
        out_specs=pl.BlockSpec((1, TR, Wout, C), lambda n, r: (n, r, 0, 0)),
        compiler_params=_CPARAMS(("parallel", "parallel")),
    )


@functools.lru_cache(maxsize=None)
def _pool_fc_fn(N, S, C, P):
    return pl.pallas_call(
        _pool_fc_kernel,
        out_shape=jax.ShapeDtypeStruct((N, P), jnp.float32),
        grid=(1,),
        in_specs=[
            pl.BlockSpec((N, S, C), lambda i: (0, 0, 0)),
            pl.BlockSpec((C, P), lambda i: (0, 0)),
        ],
        out_specs=pl.BlockSpec((N, P), lambda i: (0, 0)),
        compiler_params=_CPARAMS(("arbitrary",)),
    )


# ----------------------------------------------------------------------------
# Layer wrappers (layout glue only: pad / im2col / phase split / reshapes)
# ----------------------------------------------------------------------------
def matmul_bias(x, w, bias, relu, out_dtype=None):
    """x: (M, K) bf16; w: (K, Cout) bf16 (BN scale folded); bias: (1, Cout) f32."""
    M, K = x.shape
    Cout = w.shape[1]
    od = jnp.dtype(out_dtype) if out_dtype is not None else x.dtype
    bytes_per_row = (K + Cout) * 2 + Cout * 4
    TM = _choose_tm(M, bytes_per_row)
    Mp = _round_up(M, TM)
    xp = jnp.pad(x, ((0, Mp - M), (0, 0))) if Mp != M else x
    out = _matmul_fn(Mp, K, Cout, TM, bool(relu), od.name)(xp, w, bias)
    return out[:M] if Mp != M else out


def pw_conv(x, w, bias, relu):
    """1x1 conv + folded BN (+ReLU). x: NHWC; w: (Cin, Cout)."""
    N, H, W, C = x.shape
    out = matmul_bias(x.reshape(N * H * W, C), w, bias, relu)
    return out.reshape(N, H, W, w.shape[1])


def concat_pw_conv(left, y, w, bias, relu=True):
    """Block tail for stride-1: out = concat(left, relu(pw(y))) in one kernel."""
    N, H, W, CL = left.shape
    K = y.shape[-1]
    Cout = w.shape[1]
    M = N * H * W
    l2 = left.reshape(M, CL)
    y2 = y.reshape(M, K)
    bytes_per_row = (2 * CL + 2 * K + 2 * Cout) * 2
    TM = _choose_tm(M, bytes_per_row)
    Mp = _round_up(M, TM)
    if Mp != M:
        l2 = jnp.pad(l2, ((0, Mp - M), (0, 0)))
        y2 = jnp.pad(y2, ((0, Mp - M), (0, 0)))
    out = _concat_matmul_fn(Mp, CL, K, Cout, TM, bool(relu))(l2, y2, w, bias)
    out = out[:M] if Mp != M else out
    return out.reshape(N, H, W, CL + Cout)


def dual_concat_pw_conv(z, proj_wb, y, main_wb):
    """Block tail for stride-2: out = concat(relu(pw(z)), relu(pw(y)))."""
    wz, bz = proj_wb
    wy, by = main_wb
    N, H, W, Kl = z.shape
    Kr = y.shape[-1]
    CL = wz.shape[1]
    Cr = wy.shape[1]
    M = N * H * W
    z2 = z.reshape(M, Kl)
    y2 = y.reshape(M, Kr)
    bytes_per_row = (Kl + Kr + CL + Cr) * 4
    TM = _choose_tm(M, bytes_per_row)
    Mp = _round_up(M, TM)
    if Mp != M:
        z2 = jnp.pad(z2, ((0, Mp - M), (0, 0)))
        y2 = jnp.pad(y2, ((0, Mp - M), (0, 0)))
    out = _dual_concat_matmul_fn(Mp, Kl, CL, Kr, Cr, TM)(z2, wz, bz, y2, wy, by)
    out = out[:M] if Mp != M else out
    return out.reshape(N, H, W, CL + Cr)


def depthwise_conv(x, w_taps, bias, *, ksize, stride, relu):
    """Depthwise k x k conv (pad k//2, groups=C) + folded BN (+ReLU).
    x: NHWC; w_taps: (k*k, C) f32 (BN scale folded); bias: (1, C) f32.
    Taps are generated inside the Pallas kernel; stride 2 is phase-decomposed
    in the wrapper so the kernel only needs contiguous static slices."""
    N, H, W, C = x.shape
    k, s = ksize, stride
    pad = k // 2
    Hout = (H + 2 * pad - k) // s + 1
    Wout = (W + 2 * pad - k) // s + 1
    Hp, Wp = H + 2 * pad, W + 2 * pad
    Hp2, Wp2 = _round_up(Hp, s), _round_up(Wp, s)
    xp = jnp.pad(x, ((0, 0), (pad, pad + Hp2 - Hp), (pad, pad + Wp2 - Wp), (0, 0)))
    Hq, Wq = Hp2 // s, Wp2 // s
    if s == 1:
        xph = xp                                            # (N, Hq, Wq, C)
    else:
        xph = xp.reshape(N, Hq, s, Wq, s, C)
        xph = jnp.transpose(xph, (0, 2, 4, 1, 3, 5)).reshape(N * s * s, Hq, Wq, C)
    TR = _pick_row_chunk(Hout, Wout, C)
    fn = _dw_fn(N, s, Hq, Wq, C, Hout, Wout, TR, k, bool(relu),
                jnp.dtype(x.dtype).name)
    return fn(xph, w_taps, bias)


def first_conv_bn_relu(x, w_im2col, bias):
    """Stem: dense 3x3 stride-2 pad-1 conv + BN + ReLU via im2col + fused matmul."""
    N, H, W, Cin = x.shape
    k, stride, pad = 3, 2, 1
    Hout = (H + 2 * pad - k) // stride + 1
    Wout = (W + 2 * pad - k) // stride + 1
    xp = jnp.pad(x, ((0, 0), (pad, pad), (pad, pad), (0, 0)))
    cols = []
    for kh in range(k):
        for kw in range(k):
            cols.append(xp[:, kh:kh + (Hout - 1) * stride + 1:stride,
                              kw:kw + (Wout - 1) * stride + 1:stride, :])
    p = jnp.stack(cols, axis=3).reshape(N * Hout * Wout, k * k * Cin)
    p = p.astype(jnp.bfloat16)
    out = matmul_bias(p, w_im2col, bias, relu=True)
    return out.reshape(N, Hout, Wout, w_im2col.shape[1])


def global_pool_classify(x, w_cls):
    """x: (N, S, C) bf16; w_cls: (C, ncls_padded) bf16. Fused mean + Linear."""
    N, S, C = x.shape
    return _pool_fc_fn(N, S, C, w_cls.shape[1])(x, w_cls)


# ----------------------------------------------------------------------------
# Parameter construction (mirrors _initialize_weights; BN folded, bf16 weights)
# ----------------------------------------------------------------------------
_RNG = np.random.default_rng(0)


def _conv_w_np(cout, cin, k, std):
    return _RNG.normal(0.0, std, size=(cout, cin, k, k)).astype(np.float32)


def _bn_fold(c, eps=1e-5):
    gamma = np.ones((c,), np.float32)
    beta = np.full((c,), 1e-4, np.float32)
    mean = np.zeros((c,), np.float32)
    var = np.ones((c,), np.float32)
    scale = gamma / np.sqrt(var + eps)
    bias = beta - mean * scale
    return scale, bias


def _prep_pw(cin, cout, std=None):
    std = (1.0 / cin) if std is None else std
    w = _conv_w_np(cout, cin, 1, std)
    scale, bias = _bn_fold(cout)
    wm = w.reshape(cout, cin).T * scale[None, :]             # (Cin, Cout)
    return jnp.asarray(wm, jnp.bfloat16), jnp.asarray(bias[None, :], jnp.float32)


def _prep_dw(c, k):
    w = _conv_w_np(c, 1, k, 1.0)                             # groups=C -> std 1/1
    scale, bias = _bn_fold(c)
    wt = w.reshape(c, k * k).T * scale[None, :]              # (k*k, C), tap = kh*k+kw
    return jnp.asarray(wt, jnp.float32), jnp.asarray(bias[None, :], jnp.float32)


def _make_shufflenet(inp, oup, mid, ksize, stride):
    outputs = oup - inp
    p = {'type': 'shufflenet', 'ksize': ksize, 'stride': stride}
    p['pw1'] = _prep_pw(inp, mid)
    p['dw'] = _prep_dw(mid, ksize)
    p['pw2'] = _prep_pw(mid, outputs)
    if stride == 2:
        p['proj_dw'] = _prep_dw(inp, ksize)
        p['proj_pw'] = _prep_pw(inp, inp)
    return p


def _make_xception(inp, oup, mid, stride):
    outputs = oup - inp
    p = {'type': 'xception', 'stride': stride}
    p['dw1'] = _prep_dw(inp, 3)
    p['pw1'] = _prep_pw(inp, mid)
    p['dw2'] = _prep_dw(mid, 3)
    p['pw2'] = _prep_pw(mid, mid)
    p['dw3'] = _prep_dw(mid, 3)
    p['pw3'] = _prep_pw(mid, outputs)
    if stride == 2:
        p['proj_dw'] = _prep_dw(inp, 3)
        p['proj_pw'] = _prep_pw(inp, inp)
    return p


def build_model(architecture, channels_scales, input_size=224, n_class=1000):
    assert input_size % 32 == 0
    stage_repeats = [4, 4, 8, 4]
    stage_out_channels = [-1, 16, 64, 160, 320, 640, 1024]
    params = {'n_class': n_class}

    # Stem (3x3 s2 conv + BN + ReLU): im2col weight layout (kh, kw, ci) x co.
    input_channel = stage_out_channels[1]
    w = _conv_w_np(input_channel, 3, 3, 0.01)                # 'first' in name -> std 0.01
    scale, bias = _bn_fold(input_channel)
    wm = w.transpose(2, 3, 1, 0).reshape(27, input_channel) * scale[None, :]
    params['first_conv'] = (jnp.asarray(wm, jnp.bfloat16),
                            jnp.asarray(bias[None, :], jnp.float32))

    blocks = []
    arch_idx = 0
    for idxstage in range(len(stage_repeats)):
        numrepeat = stage_repeats[idxstage]
        output_channel = stage_out_channels[idxstage + 2]
        for i in range(numrepeat):
            if i == 0:
                inp, outp, stride = input_channel, output_channel, 2
            else:
                inp, outp, stride = input_channel // 2, output_channel, 1
            block_index = architecture[arch_idx]
            mid = int((outp // 2) * channels_scales[arch_idx])
            arch_idx += 1
            if block_index in (0, 1, 2):
                ksize = {0: 3, 1: 5, 2: 7}[block_index]
                blocks.append(_make_shufflenet(inp, outp, mid, ksize, stride))
            elif block_index == 3:
                blocks.append(_make_xception(inp, outp, mid, stride))
            else:
                raise NotImplementedError
            input_channel = output_channel
    assert arch_idx == len(architecture)
    params['blocks'] = blocks

    params['conv_last'] = _prep_pw(input_channel, stage_out_channels[-1])

    # Classifier: pad 1000 -> 1024 output lanes (zero cols), bf16.
    wc = _RNG.normal(0.0, 0.01, size=(n_class, stage_out_channels[-1])).astype(np.float32)
    ncls_pad = _round_up(n_class, 128)
    wpad = np.zeros((stage_out_channels[-1], ncls_pad), np.float32)
    wpad[:, :n_class] = wc.T
    params['classifier_w'] = jnp.asarray(wpad, jnp.bfloat16)
    return params


# ----------------------------------------------------------------------------
# Forward pass (run the whole thing under one jax.jit)
# ----------------------------------------------------------------------------
def _channel_split(x):
    # PyTorch channel_shuffle: even channels -> x_proj, odd channels -> branch input.
    return x[..., 0::2], x[..., 1::2]


def _shufflenet_block(x, p):
    stride, ksize = p['stride'], p['ksize']
    if stride == 1:
        x_proj, xb = _channel_split(x)
        y = pw_conv(xb, *p['pw1'], relu=True)
        y = depthwise_conv(y, *p['dw'], ksize=ksize, stride=1, relu=False)
        return concat_pw_conv(x_proj, y, *p['pw2'])          # pw2 + concat fused
    y = pw_conv(x, *p['pw1'], relu=True)
    y = depthwise_conv(y, *p['dw'], ksize=ksize, stride=2, relu=False)
    z = depthwise_conv(x, *p['proj_dw'], ksize=ksize, stride=2, relu=False)
    return dual_concat_pw_conv(z, p['proj_pw'], y, p['pw2'])  # proj_pw + pw2 + concat


def _xception_block(x, p):
    stride = p['stride']
    if stride == 1:
        x_proj, xb = _channel_split(x)
    else:
        x_proj, xb = x, x
    y = depthwise_conv(xb, *p['dw1'], ksize=3, stride=stride, relu=False)
    y = pw_conv(y, *p['pw1'], relu=True)
    y = depthwise_conv(y, *p['dw2'], ksize=3, stride=1, relu=False)
    y = pw_conv(y, *p['pw2'], relu=True)
    y = depthwise_conv(y, *p['dw3'], ksize=3, stride=1, relu=False)
    if stride == 1:
        return concat_pw_conv(x_proj, y, *p['pw3'])
    z = depthwise_conv(x, *p['proj_dw'], ksize=3, stride=2, relu=False)
    return dual_concat_pw_conv(z, p['proj_pw'], y, p['pw3'])


def forward(x_nchw, params):
    # layout: NCHW in (PyTorch), NHWC/bf16 inside.
    x = jnp.transpose(x_nchw, (0, 2, 3, 1)).astype(jnp.float32)
    x = first_conv_bn_relu(x, *params['first_conv'])          # bf16 NHWC
    for p in params['blocks']:
        x = _shufflenet_block(x, p) if p['type'] == 'shufflenet' else _xception_block(x, p)
    x = pw_conv(x, *params['conv_last'], relu=True)
    N, H, W, C = x.shape
    # AvgPool2d(7): final map is exactly 7x7 for a 224 input -> global mean.
    logits = global_pool_classify(x.reshape(N, H * W, C), params['classifier_w'])
    return logits[:, :params['n_class']]                      # (N, n_class), f32


def make_forward(params):
    """Single jit over the whole network: params are closed-over constants, so
    strings/ints in the param dict never hit jit's pytree flattening."""
    return jax.jit(lambda x_in: forward(x_in, params))


# ----------------------------------------------------------------------------
# Self-check of the workhorse kernels against XLA references
# ----------------------------------------------------------------------------
def _self_check():
    k1, k2 = jax.random.split(jax.random.PRNGKey(42))

    # fused matmul + bias (+ReLU) kernel (bf16 MXU, f32 epilogue)
    a = jax.random.normal(k1, (100, 48), jnp.float32).astype(jnp.bfloat16)
    w = jax.random.normal(k2, (48, 80), jnp.float32).astype(jnp.bfloat16)
    b = jnp.linspace(-0.1, 0.1, 80, dtype=jnp.float32).reshape(1, -1)
    got = matmul_bias(a, w, b, relu=True, out_dtype=jnp.float32)
    want = jnp.maximum(
        jnp.dot(a.astype(jnp.float32), w.astype(jnp.float32),
                precision=jax.lax.Precision.HIGHEST) + b, 0.0)
    np.testing.assert_allclose(np.asarray(got), np.asarray(want), rtol=2e-2, atol=2e-2)

    # depthwise conv kernel, stride 1 and 2 (in-kernel taps, phase split)
    for stride in (1, 2):
        xc = jax.random.normal(k1, (2, 12, 12, 16), jnp.float32)
        wdw = jax.random.normal(k2, (16, 1, 3, 3), jnp.float32)
        w_taps = wdw.reshape(16, 9).T.astype(jnp.float32)
        bias = jnp.zeros((1, 16), jnp.float32)
        got = depthwise_conv(xc.astype(jnp.bfloat16), w_taps, bias,
                             ksize=3, stride=stride, relu=False).astype(jnp.float32)
        want = jax.lax.conv_general_dilated(
            jnp.transpose(xc.astype(jnp.bfloat16).astype(jnp.float32), (0, 3, 1, 2)),
            wdw, (stride, stride), ((1, 1), (1, 1)),
            feature_group_count=16, precision=jax.lax.Precision.HIGHEST)
        want = jnp.transpose(want, (0, 2, 3, 1))
        np.testing.assert_allclose(np.asarray(got), np.asarray(want), rtol=3e-2, atol=3e-2)

    # concat-fused block tail (stride-1): out = concat(x_proj, relu(y @ w + b))
    xl = jax.random.normal(k1, (1, 6, 6, 16), jnp.float32).astype(jnp.bfloat16)
    yb = jax.random.normal(k2, (1, 6, 6, 24), jnp.float32).astype(jnp.bfloat16)
    w2 = (jax.random.normal(k1, (24, 16), jnp.float32) * 0.2).astype(jnp.bfloat16)
    b2 = jnp.linspace(-0.05, 0.05, 16, dtype=jnp.float32).reshape(1, -1)
    got = concat_pw_conv(xl, yb, w2, b2).astype(jnp.float32)
    branch = jnp.maximum(
        jnp.einsum('nhwk,kc->nhwc', yb.astype(jnp.float32), w2.astype(jnp.float32)) + b2, 0.0)
    want = jnp.concatenate([xl.astype(jnp.float32), branch], axis=-1)
    np.testing.assert_allclose(np.asarray(got), np.asarray(want), rtol=3e-2, atol=3e-2)

    # dual-matmul concat tail (stride-2): out = concat(relu(z@wl+bl), relu(y@wr+br))
    zl = jax.random.normal(k1, (1, 6, 6, 8), jnp.float32).astype(jnp.bfloat16)
    yr = jax.random.normal(k2, (1, 6, 6, 12), jnp.float32).astype(jnp.bfloat16)
    wl = (jax.random.normal(k2, (8, 8), jnp.float32) * 0.3).astype(jnp.bfloat16)
    bl = jnp.linspace(-0.05, 0.05, 8, dtype=jnp.float32).reshape(1, -1)
    wr = (jax.random.normal(k1, (12, 16), jnp.float32) * 0.3).astype(jnp.bfloat16)
    br = jnp.linspace(-0.02, 0.02, 16, dtype=jnp.float32).reshape(1, -1)
    got = dual_concat_pw_conv(zl, (wl, bl), yr, (wr, br)).astype(jnp.float32)
    wantl = jnp.maximum(
        jnp.einsum('nhwk,kc->nhwc', zl.astype(jnp.float32), wl.astype(jnp.float32)) + bl, 0.0)
    wantr = jnp.maximum(
        jnp.einsum('nhwk,kc->nhwc', yr.astype(jnp.float32), wr.astype(jnp.float32)) + br, 0.0)
    want = jnp.concatenate([wantl, wantr], axis=-1)
    np.testing.assert_allclose(np.asarray(got), np.asarray(want), rtol=3e-2, atol=3e-2)


if __name__ == "__main__":
    architecture = [0, 1, 2, 3] * 5           # 20 choice blocks (3x3 / 5x5 / 7x7 / Xception)
    channels_scales = [1.0] * 20
    n_class = 1000

    _self_check()

    params = build_model(architecture, channels_scales, input_size=224, n_class=n_class)
    fwd = make_forward(params)

    key = jax.random.PRNGKey(0)
    # AvgPool2d(7) + input_size % 32 == 0 require a 224 input (final map = 7x7);
    # batch is kept at 1 to stay small.
    x = jax.random.normal(key, (1, 3, 224, 224), dtype=jnp.float32)

    logits = jax.block_until_ready(fwd(x))
    assert logits.shape == (1, n_class), logits.shape
    assert bool(jnp.all(jnp.isfinite(logits)))
    print("KERNEL_OK")
</pallas_src>

<mosaic_0001>
module attributes {stable_mosaic.version = 11 : i64} {
  func.func @_matmul_bias_kernel(%arg0: i32, %arg1: memref<48x48xbf16, #tpu.memory_space<vmem>>, %arg2: memref<48x80xbf16, #tpu.memory_space<vmem>>, %arg3: memref<1x80xf32, #tpu.memory_space<vmem>>, %arg4: memref<48x80xf32, #tpu.memory_space<vmem>>) attributes {dimension_semantics = [#tpu.dimension_semantics<parallel>], iteration_bounds = array<i64: 3>, scalar_prefetch = 0 : i64, scratch_operands = 0 : i64, tpu.core_type = #tpu.core_type<tc>, window_params = [{transform_indices = @transform_0, window_bounds = array<i64: 48, 48>}, {pipeline_mode = #tpu.pipeline_mode<synchronous>, transform_indices = @transform_1, window_bounds = array<i64: 48, 80>}, {pipeline_mode = #tpu.pipeline_mode<synchronous>, transform_indices = @transform_2, window_bounds = array<i64: 1, 80>}, {transform_indices = @transform_3, window_bounds = array<i64: 48, 80>}]} {
    %c0 = arith.constant 0 : index
    %c0_0 = arith.constant 0 : index
    %0 = vector.load %arg1[%c0, %c0_0] : memref<48x48xbf16, #tpu.memory_space<vmem>>, vector<48x48xbf16>
    %c0_1 = arith.constant 0 : index
    %c0_2 = arith.constant 0 : index
    %1 = vector.load %arg2[%c0_1, %c0_2] : memref<48x80xbf16, #tpu.memory_space<vmem>>, vector<48x80xbf16>
    %cst = arith.constant dense<0.000000e+00> : vector<48x80xf32>
    %2 = tpu.matmul %0, %1, %cst {dimension_numbers = #tpu.dot_dimension_numbers<[1], [0], [0], [1], [0, 0, 1, 1], [], []>} : vector<48x48xbf16>, vector<48x80xbf16>, vector<48x80xf32> -> vector<48x80xf32>
    %c0_3 = arith.constant 0 : index
    %c0_4 = arith.constant 0 : index
    %3 = vector.load %arg3[%c0_3, %c0_4] : memref<1x80xf32, #tpu.memory_space<vmem>>, vector<1x80xf32>
    %4 = vector.broadcast %3 : vector<1x80xf32> to vector<48x80xf32>
    %5 = arith.addf %2, %4 : vector<48x80xf32>
    %cst_5 = arith.constant 0.000000e+00 : f32
    %6 = vector.broadcast %cst_5 : f32 to vector<48x80xf32>
    %7 = arith.maximumf %5, %6 : vector<48x80xf32>
    %c0_6 = arith.constant 0 : index
    %c0_7 = arith.constant 0 : index
    %8 = vector.load %arg4[%c0_6, %c0_7] : memref<48x80xf32, #tpu.memory_space<vmem>>, vector<48x80xf32>
    tpu.vector_store %arg4[%c0_6, %c0_7], %7 {strides = array<i32>} : memref<48x80xf32, #tpu.memory_space<vmem>>, vector<48x80xf32>,
    return
  }
  func.func @transform_0(%arg0: i32) -> (i32, i32) {
    %c0_i32 = arith.constant 0 : i32
    %c0_i32_0 = arith.constant 0 : i32
    return %arg0, %c0_i32 : i32, i32
  }
  func.func @transform_1(%arg0: i32) -> (i32, i32) {
    %c0_i32 = arith.constant 0 : i32
    %c0_i32_0 = arith.constant 0 : i32
    %c0_i32_1 = arith.constant 0 : i32
    return %c0_i32, %c0_i32_0 : i32, i32
  }
  func.func @transform_2(%arg0: i32) -> (i32, i32) {
    %c0_i32 = arith.constant 0 : i32
    %c0_i32_0 = arith.constant 0 : i32
    %c0_i32_1 = arith.constant 0 : i32
    return %c0_i32, %c0_i32_0 : i32, i32
  }
  func.func @transform_3(%arg0: i32) -> (i32, i32) {
    %c0_i32 = arith.constant 0 : i32
    %c0_i32_0 = arith.constant 0 : i32
    return %arg0, %c0_i32 : i32, i32
  }
}

</mosaic_0001>

<llo_original>
// kernel: tpu_custom_call.1
$region0: #{tpu_custom_call.1}
  #allocation0 [shape = 'u32[]', space=smem, size = 0x4, offset = 0x4, fixed_abs, tag = 'smem constant byte address 0x4 - core index']
  #allocation1 [shape = 'u32[144,128]{1,0:T(1,128)}', space=vmem, size = 0x12000, scoped, tag = 'internal scratch']
  %s0 = inlined_call_operand.hbm [shape: bf16[144,48], index: 0, kind: input, shape index: {}]
  %s1 = inlined_call_operand.hbm [shape: bf16[48,80], index: 1, kind: input, shape index: {}]
  %s2 = inlined_call_operand.hbm [shape: f32[1,80], index: 2, kind: input, shape index: {}]
  %s3 = inlined_call_operand.hbm [shape: f32[144,80], index: 3, kind: output, shape index: {}]
  %s4 = sld [smem:[#allocation0]]
  $region57: #{tpu_custom_call.1} parent=0
    _
  %s6 = ssub.s32 1, %s4
  %s7 = scalar_select 0, %s6, %s4
  $region1: #{tpu_custom_call.1} parent=0
    #allocation2 [shape = 'u8[24576]{0}', space=vmem, size = 0x6000, scoped, tag = 'input window, operand 0']
    #allocation3 [shape = 's32[2]{0}', space=sflag, size = 0x8, scoped, tag = 'scoped memory for tpu_custom_call.1']
    #allocation4 [shape = 's32[2]{0}', space=sflag, size = 0x8, scoped, tag = 'scoped memory for tpu_custom_call.1']
    #allocation5 [shape = 'u8[12288]{0}', space=vmem, size = 0x3000, scoped, tag = 'input window, operand 1, single buffered']
    #allocation6 [shape = 's32[1]{0}', space=sflag, size = 0x4, scoped, tag = 'scoped memory for tpu_custom_call.1']
    #allocation7 [shape = 'u8[512]{0}', space=vmem, size = 0x400, scoped, tag = 'input window, operand 2, single buffered']
    #allocation8 [shape = 'u8[49152]{0}', space=vmem, size = 0xc000, scoped, tag = 'output window, operand 0']
    %8 = vsyncpa [#allocation3], 0
    %s9 = scalar_lea.sflag [#allocation3], 1
    %10 = vsyncpa %s9, 0
    %11 = vsyncpa [#allocation6], 0
    %12 = vsyncpa [#allocation4], 0
    %s13 = scalar_lea.sflag [#allocation4], 1
    %14 = vsyncpa %s13, 0
    loop: start=0, step=1, limit=5
    $region2: #{tpu_custom_call.1} parent=1 // loop_pre_header
      _
    $region3: #{tpu_custom_call.1} parent=1 // loop_header
      %s16 = sphi 0, %s20
      %p17 = scmp.ge.s32.totalorder %s16, 5
      %s26 = sphi 0, %s28
      %s29 = sphi 0, %s26
      %s30 = sphi 0, %s29
      %s46 = sphi 0, %s30
      %s50 = sphi 0, %s50
      %s52 = sphi 0, %s50
      %s53 = sphi 0, %s52
      %s67 = sphi 0, %s53
      %s71 = sphi 0, %s71
      %s73 = sphi 0, %s71
      %s74 = sphi 0, %s73
      %s88 = sphi 0, %s74
      %s94 = sphi 0, %s96
      %s97 = sphi 0, %s94
      %s98 = sphi 0, %s97
      %s114 = sphi 0, %s98
    $region4: #{tpu_custom_call.1} parent=1 // loop_header_branch
      %19 = sbr.rel (%p17) target = $region8
    $region5: #{tpu_custom_call.1} parent=1 // loop_body
      %s21 = ssub.s32 %s16, 1
      %s22 = ssub.s32 %s16, 2
      %s23 = sadd.s32 %s16, 1
      %s24 = ssub.s32 %s16, %s23
      %p25 = scmp.eq.s32.totalorder %s24, 0
      %s27 = sadd.s32 %s26, 1
      %s28 = scalar_select %p25, %s26, %s27
      %p31 = pneg %p25
      %p32 = scmp.eq.s32.totalorder %s16, 2
      %p33 = por %p31, %p32
      %p34 = scmp.ne.s32.totalorder %s26, %s29
      %p35 = scmp.eq.s32.totalorder %s16, 0
      %p36 = por %p34, %p35
      %p37 = scmp.ne.s32.totalorder %s26, %s29
      %p38 = scmp.eq.s32.totalorder %s21, 2
      %p39 = por %p37, %p38
      %p40 = scmp.ne.s32.totalorder %s29, %s30
      %p41 = scmp.eq.s32.totalorder %s21, 0
      %p42 = por %p40, %p41
      %p43 = scmp.ne.s32.totalorder %s29, %s30
      %p44 = scmp.eq.s32.totalorder %s22, 2
      %p45 = por %p43, %p44
      %p47 = scmp.ne.s32.totalorder %s30, %s46
      %p48 = scmp.eq.s32.totalorder %s22, 0
      %p49 = por %p47, %p48
      %s51 = sadd.s32 %s50, 1
      %p54 = scmp.eq.s32.totalorder %s16, 2
      %p55 = scmp.ne.s32.totalorder %s50, %s52
      %p56 = scmp.eq.s32.totalorder %s16, 0
      %p57 = por %p55, %p56
      %p58 = scmp.ne.s32.totalorder %s50, %s52
      %p59 = scmp.eq.s32.totalorder %s21, 2
      %p60 = por %p58, %p59
      %p61 = scmp.ne.s32.totalorder %s52, %s53
      %p62 = scmp.eq.s32.totalorder %s21, 0
      %p63 = por %p61, %p62
      %p64 = scmp.ne.s32.totalorder %s52, %s53
      %p65 = scmp.eq.s32.totalorder %s22, 2
      %p66 = por %p64, %p65
      %p68 = scmp.ne.s32.totalorder %s53, %s67
      %p69 = scmp.eq.s32.totalorder %s22, 0
      %p70 = por %p68, %p69
      %s72 = sadd.s32 %s71, 1
      %p75 = scmp.eq.s32.totalorder %s16, 2
      %p76 = scmp.ne.s32.totalorder %s71, %s73
      %p77 = scmp.eq.s32.totalorder %s16, 0
      %p78 = por %p76, %p77
      %p79 = scmp.ne.s32.totalorder %s71, %s73
      %p80 = scmp.eq.s32.totalorder %s21, 2
      %p81 = por %p79, %p80
      %p82 = scmp.ne.s32.totalorder %s73, %s74
      %p83 = scmp.eq.s32.totalorder %s21, 0
      %p84 = por %p82, %p83
      %p85 = scmp.ne.s32.totalorder %s73, %s74
      %p86 = scmp.eq.s32.totalorder %s22, 2
      %p87 = por %p85, %p86
      %p89 = scmp.ne.s32.totalorder %s74, %s88
      %p90 = scmp.eq.s32.totalorder %s22, 0
      %p91 = por %p89, %p90
      %s92 = ssub.s32 %s16, %s23
      %p93 = scmp.eq.s32.totalorder %s92, 0
      %s95 = sadd.s32 %s94, 1
      %s96 = scalar_select %p93, %s94, %s95
      %p99 = pneg %p93
      %p100 = scmp.eq.s32.totalorder %s16, 2
      %p101 = por %p99, %p100
      %p102 = scmp.ne.s32.totalorder %s94, %s97
      %p103 = scmp.eq.s32.totalorder %s16, 0
      %p104 = por %p102, %p103
      %p105 = scmp.ne.s32.totalorder %s94, %s97
      %p106 = scmp.eq.s32.totalorder %s21, 2
      %p107 = por %p105, %p106
      %p108 = scmp.ne.s32.totalorder %s97, %s98
      %p109 = scmp.eq.s32.totalorder %s21, 0
      %p110 = por %p108, %p109
      %p111 = scmp.ne.s32.totalorder %s97, %s98
      %p112 = scmp.eq.s32.totalorder %s22, 2
      %p113 = por %p111, %p112
      %p115 = scmp.ne.s32.totalorder %s98, %s114
      %p116 = scmp.eq.s32.totalorder %s22, 0
      %p117 = por %p115, %p116
      %p118 = scmp.le.s32.totalorder 1, %s16
      %p119 = scmp.lt.s32.totalorder %s16, 4
      %p120 = pnand %p118, %p119
      %p121 = pneg %p120
      // Predicated region
      $region9: #{tpu_custom_call.1} parent=5 // pred_check
        _
      $region10: #{tpu_custom_call.1} parent=5 // pred_check_branch
        %123 = sbr.rel (%p120) target = $region12
      $region11: #{tpu_custom_call.1} parent=5 // pred_region
        %s124 = ssub.s32 %s16, 1
        // Predicated region
        $region13: #{tpu_custom_call.1} parent=11 // pred_check
          %p125 = pneg %p63
        $region14: #{tpu_custom_call.1} parent=11 // pred_check_branch
          %127 = sbr.rel (%p125) target = $region16
        $region15: #{tpu_custom_call.1} parent=11 // pred_region
          %s129 = ssub.s32 384, 384
          %130 = vsyncadd [#allocation6], %s129
          %s131 = sshll.u32 [#allocation5], 4
          %s132 = int_to_ptr.vmem [resolvable:$true] %s131
          %137 = dma.hbm_to_vmem [thread:$0]  %s1, 384, %s132, [#allocation6], 64, 64, 4
        $region16: #{tpu_custom_call.1} parent=11 // pred_fallthru
          _
        // Predicated region
        $region17: #{tpu_custom_call.1} parent=11 // pred_check
          %p138 = pneg %p84
        $region18: #{tpu_custom_call.1} parent=11 // pred_check_branch
          %140 = sbr.rel (%p138) target = $region20
        $region19: #{tpu_custom_call.1} parent=11 // pred_region
          %s142 = ssub.s32 16, 16
          %143 = vsyncadd [#allocation6], %s142
          %s145 = sshll.u32 [#allocation7], 4
          %s146 = int_to_ptr.vmem [resolvable:$true] %s145
          %148 = dma.hbm_to_vmem [thread:$0]  %s2, 16, %s146, [#allocation6]
        $region20: #{tpu_custom_call.1} parent=11 // pred_fallthru
          _
      $region12: #{tpu_custom_call.1} parent=5 // pred_fallthru
        _
      %p149 = scmp.lt.s32.totalorder %s16, 3
      // Predicated region
      $region21: #{tpu_custom_call.1} parent=5 // pred_check
        %p150 = pneg %p149
      $region22: #{tpu_custom_call.1} parent=5 // pred_check_branch
        %152 = sbr.rel (%p150) target = $region24
      $region23: #{tpu_custom_call.1} parent=5 // pred_region
        // Predicated region
        $region25: #{tpu_custom_call.1} parent=23 // pred_check
          %p153 = pneg %p36
        $region26: #{tpu_custom_call.1} parent=23 // pred_check_branch
          %155 = sbr.rel (%p153) target = $region28
        $region27: #{tpu_custom_call.1} parent=23 // pred_region
          %s156 = sand.u32 %s26, 1
          %s157 = scalar_lea.sflag [#allocation3], %s156
          %s158 = sand.u32 %s26, 1
          %s159 = smul.addr %s158, 24
          %s160 = scalar_lea.vmem [#allocation2], %s159
          %s161 = smul.u32 6, %s16
          %s163 = ssub.s32 384, 384
          %164 = vsyncadd %s157, %s163
          %s165 = smul.addr %s161, 64
          %s166 = scalar_lea.hbm %s0, %s165
          %s167 = sshll.u32 %s160, 4
          %s168 = int_to_ptr.vmem [resolvable:$true] %s167
          %173 = dma.hbm_to_vmem [thread:$0]  %s166, 384, %s168, %s157, 64, 64, 4
        $region28: #{tpu_custom_call.1} parent=23 // pred_fallthru
          _
      $region24: #{tpu_custom_call.1} parent=5 // pred_fallthru
        _
      %p174 = scmp.le.s32.totalorder 1, %s16
      %p175 = scmp.lt.s32.totalorder %s16, 4
      %p176 = pnand %p174, %p175
      %p177 = pneg %p176
      // Predicated region
      $region29: #{tpu_custom_call.1} parent=5 // pred_check
        _
      $region30: #{tpu_custom_call.1} parent=5 // pred_check_branch
        %179 = sbr.rel (%p176) target = $region32
      $region31: #{tpu_custom_call.1} parent=5 // pred_region
        %s180 = ssub.s32 %s16, 1
        %s181 = sand.u32 %s29, 1
        %s182 = scalar_lea.sflag [#allocation3], %s181
        %s183 = sand.u32 %s29, 1
        %s184 = smul.addr %s183, 24
        %s185 = scalar_lea.vmem [#allocation2], %s184
        // Predicated region
        $region33: #{tpu_custom_call.1} parent=31 // pred_check
          %p186 = pneg %p42
        $region34: #{tpu_custom_call.1} parent=31 // pred_check_branch
          %188 = sbr.rel (%p186) target = $region36
        $region35: #{tpu_custom_call.1} parent=31 // pred_region
          %189 = dma.done %s182, 384
        $region36: #{tpu_custom_call.1} parent=31 // pred_fallthru
          _
        // Predicated region
        $region37: #{tpu_custom_call.1} parent=31 // pred_check
          %p190 = pneg %p63
        $region38: #{tpu_custom_call.1} parent=31 // pred_check_branch
          %192 = sbr.rel (%p190) target = $region40
        $region39: #{tpu_custom_call.1} parent=31 // pred_region
          %193 = dma.done [#allocation6], 384
        $region40: #{tpu_custom_call.1} parent=31 // pred_fallthru
          _
        // Predicated region
        $region41: #{tpu_custom_call.1} parent=31 // pred_check
          %p194 = pneg %p84
        $region42: #{tpu_custom_call.1} parent=31 // pred_check_branch
          %196 = sbr.rel (%p194) target = $region44
        $region43: #{tpu_custom_call.1} parent=31 // pred_region
          %197 = dma.done [#allocation6], 16
        $region44: #{tpu_custom_call.1} parent=31 // pred_fallthru
          _
        %s198 = sand.u32 %s29, 1
        %s199 = scalar_lea.sflag [#allocation3], %s198
        %s200 = sand.u32 %s29, 1
        %s201 = smul.addr %s200, 24
        %s202 = scalar_lea.vmem [#allocation2], %s201
        %p203 = pneg %p42
        %p204 = pneg %p39
        %p205 = pneg %p63
        %p206 = pneg %p60
        %p207 = pneg %p84
        %p208 = pneg %p81
        %p209 = pneg %p110
        %p210 = pneg %p107
        %s211 = sand.u32 %s97, 1
        %s212 = scalar_lea.sflag [#allocation4], %s211
        %s213 = sand.u32 %s97, 1
        %s214 = smul.addr %s213, 48
        %s215 = scalar_lea.vmem [#allocation8], %s214
        %s216 = smul.u32 6, %s21
        %s217 = smul.u32 6, %s21
        %v219 = vld [vmem:[%s185] sm:$0xf]
        %v220 = vld [vmem:[%s185 + $0x4] sm:$0xf]
        %v221 = vld [vmem:[%s185 + $0x8] sm:$0xf]
        %v222 = vld [vmem:[%s185 + $0xc] sm:$0xf]
        %v223 = vld [vmem:[%s185 + $0x10] sm:$0xf]
        %v224 = vld [vmem:[%s185 + $0x14] sm:$0xf]
        %v225 = vld [vmem:[#allocation5] sm:$0xf]
        %v226 = vld [vmem:[#allocation5 + $0x4] sm:$0xf]
        %v227 = vld [vmem:[#allocation5 + $0x8] sm:$0xf]
        %v228 = vld [vmem:[#allocation5 + $0xc] sm:$0xf]
        %v229 = vld [vmem:[#allocation5 + $0x10] sm:$0xf]
        %v230 = vld [vmem:[#allocation5 + $0x14] sm:$0xf]
        %v231 = vld [vmem:[#allocation7] sm:$0x1]
        %v233 = vlaneseq
        %v234 = vshrl.u32 %v233, 7
        %v235 = vsub.s32 0, %v234
        %v236 = vrot.slane %v231, %v235
        %v244 = vunpack.c.l.b16 %v219
        %v245 = vunpack.c.l.b16 %v220
        %v246 = vunpack.c.l.b16 %v221
        %v247 = vunpack.c.l.b16 %v222
        %v248 = vunpack.c.l.b16 %v223
        %v249 = vunpack.c.l.b16 %v224
        %v250 = vpack.c.b16 %v245, %v244
        %v251 = vpack.c.b16 %v247, %v246
        %v252 = vpack.c.b16 %v249, %v248
        %v259 = vunpack.c.l.b16 %v225
        %v260 = vunpack.c.l.b16 %v226
        %v261 = vunpack.c.l.b16 %v227
        %v262 = vunpack.c.l.b16 %v228
        %v263 = vunpack.c.l.b16 %v229
        %v264 = vunpack.c.l.b16 %v230
        %v265 = vpack.c.b16 %v260, %v259
        %v266 = vpack.c.b16 %v262, %v261
        %v267 = vpack.c.b16 %v264, %v263
        %vm271 = vcmask 392192
        %v273 = vsel %vm271, %v250, 0
        %v276 = vsel %vm271, %v251, 0
        %v279 = vsel %vm271, %v252, 0
        %281 = vmatprep.subr.bf16.mxu0 0
        %282 = vmatpush1.bf16.msra.mxu0 %v265
        %283 = vmatprep.subr.bf16.mxu0 0
        %284 = vmatpush1.bf16.msra.mxu0 %v266
        %285 = vmatprep.subr.bf16.mxu0 0
        %286 = vmatpush1.bf16.msra.mxu0 %v267
        %287 = vmatprep.subr.bf16.mxu0 0
        %288 = vmatpush1.bf16.msra.mxu0 0
        %289 = vmatprep.subr.bf16.mxu0 0
        %290 = vmatpush1.bf16.msra.mxu0 0
        %291 = vmatprep.subr.bf16.mxu0 0
        %292 = vmatpush1.bf16.msra.mxu0 0
        %293 = vmatprep.subr.bf16.mxu0 0
        %294 = vmatpush1.bf16.msra.mxu0 0
        %295 = vmatprep.subr.bf16.mxu0 0
        %296 = vmatpush1.bf16.msra.mxu0 0
        %297 = vmatprep.subr.bf16.mxu0 0
        %298 = vmatpush1.bf16.msra.mxu0 0
        %299 = vmatprep.subr.bf16.mxu0 0
        %300 = vmatpush1.bf16.msra.mxu0 0
        %301 = vmatprep.subr.bf16.mxu0 0
        %302 = vmatpush1.bf16.msra.mxu0 0
        %303 = vmatprep.subr.bf16.mxu0 0
        %304 = vmatpush1.bf16.msra.mxu0 0
        %305 = vmatprep.subr.bf16.mxu0 0
        %306 = vmatpush1.bf16.msra.mxu0 0
        %307 = vmatprep.subr.bf16.mxu0 0
        %308 = vmatpush1.bf16.msra.mxu0 0
        %309 = vmatprep.subr.bf16.mxu0 0
        %310 = vmatpush1.bf16.msra.mxu0 0
        %311 = vmatprep.subr.bf16.mxu0 0
        %312 = vmatpush1.bf16.msra.mxu0 0
        %313 = vmatprep.mubr.bf16.mxu0 0
        %314 = vmatmul.mubr.bf16.gmra.mrb[0].mxu0 %v273
        %v315 = vpop.f32.mrb[0].mxu0
        %v316 = vadd.f32 %v236, %v315
        %v317 = vpop.f32.mrb[0].mxu0
        %v318 = vpop.f32.mrb[0].mxu0
        %v319 = vadd.f32 %v236, %v318
        %v320 = vpop.f32.mrb[0].mxu0
        %321 = vmatprep.mubr.bf16.mxu0 0
        %322 = vmatmul.mubr.bf16.gmra.mrb[0].mxu0 %v276
        %v323 = vpop.f32.mrb[0].mxu0
        %v324 = vadd.f32 %v236, %v323
        %v325 = vpop.f32.mrb[0].mxu0
        %v326 = vpop.f32.mrb[0].mxu0
        %v327 = vadd.f32 %v236, %v326
        %v328 = vpop.f32.mrb[0].mxu0
        %329 = vmatprep.mubr.bf16.mxu0 0
        %330 = vmatmul.mubr.bf16.gmra.mrb[0].mxu0 %v279
        %v331 = vpop.f32.mrb[0].mxu0
        %v332 = vadd.f32 %v236, %v331
        %v333 = vpop.f32.mrb[0].mxu0
        %v334 = vpop.f32.mrb[0].mxu0
        %v335 = vadd.f32 %v236, %v334
        %v336 = vpop.f32.mrb[0].mxu0
        %337 = vdwg.mxu0
        %v338 = vmax.f32 %v316, 0.0
        %v339 = vmax.f32 %v319, 0.0
        %v340 = vmax.f32 %v324, 0.0
        %v341 = vmax.f32 %v327, 0.0
        %v342 = vmax.f32 %v332, 0.0
        %v343 = vmax.f32 %v335, 0.0
        %vm344 = vcmask 654336
        %345 = vst.msk [vmem:[%s215] sm:$0xff] %vm344, %v338
        %346 = vst.msk [vmem:[%s215 + $0x8] sm:$0xff] %vm344, %v339
        %347 = vst.msk [vmem:[%s215 + $0x10] sm:$0xff] %vm344, %v340
        %348 = vst.msk [vmem:[%s215 + $0x18] sm:$0xff] %vm344, %v341
        %349 = vst.msk [vmem:[%s215 + $0x20] sm:$0xff] %vm344, %v342
        %350 = vst.msk [vmem:[%s215 + $0x28] sm:$0xff] %vm344, %v343
        %s351 = sand.u32 %s97, 1
        %s352 = scalar_lea.sflag [#allocation4], %s351
        %s353 = sand.u32 %s97, 1
        %s354 = smul.addr %s353, 48
        %s355 = scalar_lea.vmem [#allocation8], %s354
        // Predicated region
        $region45: #{tpu_custom_call.1} parent=31 // pred_check
          %p356 = pneg %p107
        $region46: #{tpu_custom_call.1} parent=31 // pred_check_branch
          %358 = sbr.rel (%p356) target = $region48
        $region47: #{tpu_custom_call.1} parent=31 // pred_region
          %s359 = smul.u32 6, %s21
          %s361 = ssub.s32 768, 768
          %362 = vsyncadd %s352, %s361
          %s363 = smul.addr %s359, 128
          %s364 = scalar_lea.hbm %s3, %s363
          %s365 = sshll.u32 %s355, 4
          %s366 = int_to_ptr.vmem [resolvable:$true] %s365
          %371 = dma.vmem_to_hbm [thread:$0]  %s366, 768, %s364, %s352, 128, 128, 8
        $region48: #{tpu_custom_call.1} parent=31 // pred_fallthru
          _
      $region32: #{tpu_custom_call.1} parent=5 // pred_fallthru
        _
      %p372 = scmp.le.s32.totalorder 2, %s16
      // Predicated region
      $region49: #{tpu_custom_call.1} parent=5 // pred_check
        %p373 = pneg %p372
      $region50: #{tpu_custom_call.1} parent=5 // pred_check_branch
        %375 = sbr.rel (%p373) target = $region52
      $region51: #{tpu_custom_call.1} parent=5 // pred_region
        %s376 = ssub.s32 %s16, 2
        // Predicated region
        $region53: #{tpu_custom_call.1} parent=51 // pred_check
          %p377 = pneg %p113
        $region54: #{tpu_custom_call.1} parent=51 // pred_check_branch
          %379 = sbr.rel (%p377) target = $region56
        $region55: #{tpu_custom_call.1} parent=51 // pred_region
          %s380 = sand.u32 %s98, 1
          %s381 = scalar_lea.sflag [#allocation4], %s380
          %s382 = sand.u32 %s98, 1
          %s383 = smul.addr %s382, 48
          %s384 = scalar_lea.vmem [#allocation8], %s383
          %385 = dma.done %s381, 768
        $region56: #{tpu_custom_call.1} parent=51 // pred_fallthru
          _
      $region52: #{tpu_custom_call.1} parent=5 // pred_fallthru
        _
    $region6: #{tpu_custom_call.1} parent=1 // loop_footer
      %s20 = sadd.s32 1, %s16
    $region7: #{tpu_custom_call.1} parent=1 // loop_footer_branch
      %15 = sbr.rel target = $region3
    $region8: #{tpu_custom_call.1} parent=1 // loop_exit
      _
    %386 = vsyncpa [#allocation3], 1
    %s387 = scalar_lea.sflag [#allocation3], 1
    %388 = vsyncpa %s387, 1
    %389 = vsyncpa [#allocation6], 1
    %390 = vsyncpa [#allocation4], 1
    %s391 = scalar_lea.sflag [#allocation4], 1
    %392 = vsyncpa %s391, 1

</llo_original>
